<compile_context>
chip_gen: v6e
topology: v6e:2x2x1
jax: 0.10.0
libtpu: 0.0.40
codegen_flags: <defaults>
</compile_context>

<pallas_src>
import functools

import jax
import jax.numpy as jnp
import numpy as np
from jax.experimental import pallas as pl
from jax.experimental.pallas import tpu as pltpu


# ------------------------------ fused kernel --------------------------------

def _down_fused_kernel(x_ref, w_ref, mask_ref, gamma_ref, beta_ref, o_ref, *,
                       cout, wrow, mp, inv_count):
    """Fused 3x3 conv (9 shifted matmuls) + BatchNorm (batch stats) + LeakyReLU(0.2).

    x_ref:     (Cin, mp + 2*guard) bf16 -- pooled input with 1-px conv halo, channels
               on sublanes, (batch, padded spatial) flattened on lanes, plus a
               guard = wrow+1 column pad each side so every conv tap is a static slice.
    w_ref:     (9, Cout, Cin) bf16      -- tap (ky*3+kx) holds W[:, :, ky, kx].
    mask_ref:  (1, mp) f32              -- 1.0 at valid (interior) output positions.
    gamma_ref: (Cout, 1) f32, beta_ref: (Cout, 1) f32.
    o_ref:     (Cout, mp) f32           -- lane-dense output (halo lanes hold garbage
               that the wrapper slices away).
    """
    guard = wrow + 1
    acc = jnp.zeros((cout, mp), jnp.float32)
    for dy in range(3):
        for dx in range(3):
            off = guard + (dy - 1) * wrow + (dx - 1)          # static lane offset
            acc = acc + jnp.dot(w_ref[dy * 3 + dx],
                                x_ref[:, off:off + mp],
                                preferred_element_type=jnp.float32)

    # BatchNorm2d, training mode: biased mean/var over the valid positions only.
    vf = mask_ref[...]                                              # (1, mp)
    mean = jnp.sum(acc * vf, axis=1, keepdims=True) * inv_count     # (Cout, 1)
    diff = (acc - mean) * vf
    var = jnp.sum(diff * diff, axis=1, keepdims=True) * inv_count   # biased variance
    scale = gamma_ref[...] * jax.lax.rsqrt(var + 1e-5)              # eps = 1e-5 (PyTorch)
    shift = beta_ref[...] - mean * scale
    y = acc * scale + shift                                         # fused norm + affine
    o_ref[...] = jnp.where(y >= 0.0, y, 0.2 * y)                    # LeakyReLU(0.2)


# ------------------------------- wrapper -------------------------------------

def down_forward(x_nchw, w_oihw, gamma, beta):
    n, cin, h, w = x_nchw.shape
    assert h % 2 == 0 and w % 2 == 0
    cout = w_oihw.shape[0]
    hp, wp = h // 2, w // 2
    hrow, wrow = hp + 2, wp + 2           # conv-halo-padded spatial dims
    mp = n * hrow * wrow                  # flattened lane-axis length
    guard = wrow + 1                      # covers the largest conv-tap shift

    # MaxPool2d(2) directly in NCHW (exact, f32).
    pooled = x_nchw.reshape(n, cin, hp, 2, wp, 2).max(axis=(3, 5))
    # Channels-major + 1-px zero halo + flatten + guard pad -> (Cin, mp + 2*guard).
    xc = jnp.transpose(pooled, (1, 0, 2, 3))                 # (Cin, N, Hp, Wp)
    xc = jnp.pad(xc, ((0, 0), (0, 0), (1, 1), (1, 1)))       # (Cin, N, Hp+2, Wp+2)
    xbig = jnp.pad(xc.reshape(cin, mp),
                   ((0, 0), (guard, guard))).astype(jnp.bfloat16)

    # PyTorch conv weight (Cout, Cin, 3, 3) -> (ky, kx, Cout, Cin) -> (9, Cout, Cin).
    w9 = jnp.transpose(w_oihw, (2, 3, 0, 1)).reshape(9, cout, cin).astype(jnp.bfloat16)

    # Validity mask of interior (real) output positions in the flattened layout.
    mimg = jnp.pad(jnp.ones((hp, wp), jnp.float32), ((1, 1), (1, 1))).reshape(-1)
    vmask = jnp.tile(mimg, n).reshape(1, mp)

    gamma2 = gamma.reshape(cout, 1).astype(jnp.float32)
    beta2 = beta.reshape(cout, 1).astype(jnp.float32)

    kernel = functools.partial(_down_fused_kernel, cout=cout, wrow=wrow, mp=mp,
                               inv_count=1.0 / float(n * hp * wp))

    # NOTE: for realistic N*Hp*Wp this single block should become a tiled M-grid
    # ("parallel" axis for v7x's 2 TCs) with sum/sumsq BN accumulators and an explicit
    # vmem_limit_bytes; at this toy size a grid is pure per-step overhead.
    out2 = pl.pallas_call(
        kernel,
        out_shape=jax.ShapeDtypeStruct((cout, mp), jnp.float32),
        in_specs=[pl.BlockSpec(memory_space=pltpu.MemorySpace.VMEM)] * 5,
        out_specs=pl.BlockSpec(memory_space=pltpu.MemorySpace.VMEM),
    )(xbig, w9, vmask, gamma2, beta2)

    # (Cout, mp) -> (Cout, N, Hp+2, Wp+2) -> drop halo -> NCHW.
    out = out2.reshape(cout, n, hrow, wrow)[:, :, 1:-1, 1:-1]
    return jnp.transpose(out, (1, 0, 2, 3))


# ------------------------- pure-JAX reference check --------------------------

def _down_reference(x_nchw, w_oihw, gamma, beta, eps=1e-5):
    """Reference with the same precision policy (bf16 conv inputs, f32 accumulation)."""
    n, c, h, w = x_nchw.shape
    pooled = x_nchw.reshape(n, c, h // 2, 2, w // 2, 2).max(axis=(3, 5))
    y = jax.lax.conv_general_dilated(
        pooled.astype(jnp.bfloat16), w_oihw.astype(jnp.bfloat16),
        window_strides=(1, 1), padding=((1, 1), (1, 1)),
        dimension_numbers=('NCHW', 'OIHW', 'NCHW'),
        preferred_element_type=jnp.float32)
    mean = y.mean(axis=(0, 2, 3), keepdims=True)
    var = y.var(axis=(0, 2, 3), keepdims=True)            # biased, BN training mode
    yn = (y - mean) * jax.lax.rsqrt(var + eps)
    yn = yn * gamma.reshape(1, -1, 1, 1) + beta.reshape(1, -1, 1, 1)
    return jnp.where(yn >= 0, yn, 0.2 * yn)


# ---------------------------------- main -------------------------------------

if __name__ == "__main__":
    key = jax.random.PRNGKey(0)
    k1, k2, k3, k4 = jax.random.split(key, 4)

    N, Cin, H, W = 2, 4, 16, 16
    Cout = 8

    x = jax.random.normal(k1, (N, Cin, H, W), jnp.float32)
    w = 0.1 * jax.random.normal(k2, (Cout, Cin, 3, 3), jnp.float32)   # conv weight, no bias
    gamma = 1.0 + 0.1 * jax.random.normal(k3, (Cout,), jnp.float32)   # BN weight
    beta = 0.1 * jax.random.normal(k4, (Cout,), jnp.float32)          # BN bias
    # TODO(synk): BatchNorm running_mean/running_var in-place updates are stateful side
    # effects and are not reproduced (they do not affect the training-mode forward output).

    out = jax.jit(down_forward)(x, w, gamma, beta)
    jax.block_until_ready(out)

    assert out.shape == (N, Cout, H // 2, W // 2)
    ref = _down_reference(x, w, gamma, beta)
    np.testing.assert_allclose(np.asarray(out), np.asarray(ref), rtol=2e-3, atol=2e-3)

    print("KERNEL_OK")
</pallas_src>

<mosaic_0001>
module attributes {stable_mosaic.version = 11 : i64} {
  func.func @_down_fused_kernel(%arg0: memref<4x222xbf16, #tpu.memory_space<vmem>>, %arg1: memref<9x8x4xbf16, #tpu.memory_space<vmem>>, %arg2: memref<1x200xf32, #tpu.memory_space<vmem>>, %arg3: memref<8x1xf32, #tpu.memory_space<vmem>>, %arg4: memref<8x1xf32, #tpu.memory_space<vmem>>, %arg5: memref<8x200xf32, #tpu.memory_space<vmem>>) attributes {dimension_semantics = [], scalar_prefetch = 0 : i64, scratch_operands = 0 : i64, tpu.core_type = #tpu.core_type<tc>} {
    %cst = arith.constant 0.000000e+00 : f32
    %0 = vector.broadcast %cst : f32 to vector<8x200xf32>
    %c0 = arith.constant 0 : index
    %c0_0 = arith.constant 0 : index
    %c0_1 = arith.constant 0 : index
    %1 = vector.load %arg1[%c0, %c0_0, %c0_1] : memref<9x8x4xbf16, #tpu.memory_space<vmem>>, vector<1x8x4xbf16>
    %2 = vector.shape_cast %1 : vector<1x8x4xbf16> to vector<8x4xbf16>
    %c0_2 = arith.constant 0 : index
    %c0_3 = arith.constant 0 : index
    %3 = vector.load %arg0[%c0_2, %c0_3] : memref<4x222xbf16, #tpu.memory_space<vmem>>, vector<4x200xbf16>
    %cst_4 = arith.constant dense<0.000000e+00> : vector<8x200xf32>
    %4 = tpu.matmul %2, %3, %cst_4 {dimension_numbers = #tpu.dot_dimension_numbers<[1], [0], [0], [1], [0, 0, 1, 1], [], []>} : vector<8x4xbf16>, vector<4x200xbf16>, vector<8x200xf32> -> vector<8x200xf32>
    %5 = arith.addf %0, %4 : vector<8x200xf32>
    %c1 = arith.constant 1 : index
    %c0_5 = arith.constant 0 : index
    %c0_6 = arith.constant 0 : index
    %6 = vector.load %arg1[%c1, %c0_5, %c0_6] : memref<9x8x4xbf16, #tpu.memory_space<vmem>>, vector<1x8x4xbf16>
    %7 = vector.shape_cast %6 : vector<1x8x4xbf16> to vector<8x4xbf16>
    %c0_7 = arith.constant 0 : index
    %c1_8 = arith.constant 1 : index
    %8 = vector.load %arg0[%c0_7, %c1_8] : memref<4x222xbf16, #tpu.memory_space<vmem>>, vector<4x200xbf16>
    %cst_9 = arith.constant dense<0.000000e+00> : vector<8x200xf32>
    %9 = tpu.matmul %7, %8, %cst_9 {dimension_numbers = #tpu.dot_dimension_numbers<[1], [0], [0], [1], [0, 0, 1, 1], [], []>} : vector<8x4xbf16>, vector<4x200xbf16>, vector<8x200xf32> -> vector<8x200xf32>
    %10 = arith.addf %5, %9 : vector<8x200xf32>
    %c2 = arith.constant 2 : index
    %c0_10 = arith.constant 0 : index
    %c0_11 = arith.constant 0 : index
    %11 = vector.load %arg1[%c2, %c0_10, %c0_11] : memref<9x8x4xbf16, #tpu.memory_space<vmem>>, vector<1x8x4xbf16>
    %12 = vector.shape_cast %11 : vector<1x8x4xbf16> to vector<8x4xbf16>
    %c0_12 = arith.constant 0 : index
    %c2_13 = arith.constant 2 : index
    %13 = vector.load %arg0[%c0_12, %c2_13] : memref<4x222xbf16, #tpu.memory_space<vmem>>, vector<4x200xbf16>
    %cst_14 = arith.constant dense<0.000000e+00> : vector<8x200xf32>
    %14 = tpu.matmul %12, %13, %cst_14 {dimension_numbers = #tpu.dot_dimension_numbers<[1], [0], [0], [1], [0, 0, 1, 1], [], []>} : vector<8x4xbf16>, vector<4x200xbf16>, vector<8x200xf32> -> vector<8x200xf32>
    %15 = arith.addf %10, %14 : vector<8x200xf32>
    %c3 = arith.constant 3 : index
    %c0_15 = arith.constant 0 : index
    %c0_16 = arith.constant 0 : index
    %16 = vector.load %arg1[%c3, %c0_15, %c0_16] : memref<9x8x4xbf16, #tpu.memory_space<vmem>>, vector<1x8x4xbf16>
    %17 = vector.shape_cast %16 : vector<1x8x4xbf16> to vector<8x4xbf16>
    %c0_17 = arith.constant 0 : index
    %c10 = arith.constant 10 : index
    %18 = vector.load %arg0[%c0_17, %c10] : memref<4x222xbf16, #tpu.memory_space<vmem>>, vector<4x200xbf16>
    %cst_18 = arith.constant dense<0.000000e+00> : vector<8x200xf32>
    %19 = tpu.matmul %17, %18, %cst_18 {dimension_numbers = #tpu.dot_dimension_numbers<[1], [0], [0], [1], [0, 0, 1, 1], [], []>} : vector<8x4xbf16>, vector<4x200xbf16>, vector<8x200xf32> -> vector<8x200xf32>
    %20 = arith.addf %15, %19 : vector<8x200xf32>
    %c4 = arith.constant 4 : index
    %c0_19 = arith.constant 0 : index
    %c0_20 = arith.constant 0 : index
    %21 = vector.load %arg1[%c4, %c0_19, %c0_20] : memref<9x8x4xbf16, #tpu.memory_space<vmem>>, vector<1x8x4xbf16>
    %22 = vector.shape_cast %21 : vector<1x8x4xbf16> to vector<8x4xbf16>
    %c0_21 = arith.constant 0 : index
    %c11 = arith.constant 11 : index
    %23 = vector.load %arg0[%c0_21, %c11] : memref<4x222xbf16, #tpu.memory_space<vmem>>, vector<4x200xbf16>
    %cst_22 = arith.constant dense<0.000000e+00> : vector<8x200xf32>
    %24 = tpu.matmul %22, %23, %cst_22 {dimension_numbers = #tpu.dot_dimension_numbers<[1], [0], [0], [1], [0, 0, 1, 1], [], []>} : vector<8x4xbf16>, vector<4x200xbf16>, vector<8x200xf32> -> vector<8x200xf32>
    %25 = arith.addf %20, %24 : vector<8x200xf32>
    %c5 = arith.constant 5 : index
    %c0_23 = arith.constant 0 : index
    %c0_24 = arith.constant 0 : index
    %26 = vector.load %arg1[%c5, %c0_23, %c0_24] : memref<9x8x4xbf16, #tpu.memory_space<vmem>>, vector<1x8x4xbf16>
    %27 = vector.shape_cast %26 : vector<1x8x4xbf16> to vector<8x4xbf16>
    %c0_25 = arith.constant 0 : index
    %c12 = arith.constant 12 : index
    %28 = vector.load %arg0[%c0_25, %c12] : memref<4x222xbf16, #tpu.memory_space<vmem>>, vector<4x200xbf16>
    %cst_26 = arith.constant dense<0.000000e+00> : vector<8x200xf32>
    %29 = tpu.matmul %27, %28, %cst_26 {dimension_numbers = #tpu.dot_dimension_numbers<[1], [0], [0], [1], [0, 0, 1, 1], [], []>} : vector<8x4xbf16>, vector<4x200xbf16>, vector<8x200xf32> -> vector<8x200xf32>
    %30 = arith.addf %25, %29 : vector<8x200xf32>
    %c6 = arith.constant 6 : index
    %c0_27 = arith.constant 0 : index
    %c0_28 = arith.constant 0 : index
    %31 = vector.load %arg1[%c6, %c0_27, %c0_28] : memref<9x8x4xbf16, #tpu.memory_space<vmem>>, vector<1x8x4xbf16>
    %32 = vector.shape_cast %31 : vector<1x8x4xbf16> to vector<8x4xbf16>
    %c0_29 = arith.constant 0 : index
    %c20 = arith.constant 20 : index
    %33 = vector.load %arg0[%c0_29, %c20] : memref<4x222xbf16, #tpu.memory_space<vmem>>, vector<4x200xbf16>
    %cst_30 = arith.constant dense<0.000000e+00> : vector<8x200xf32>
    %34 = tpu.matmul %32, %33, %cst_30 {dimension_numbers = #tpu.dot_dimension_numbers<[1], [0], [0], [1], [0, 0, 1, 1], [], []>} : vector<8x4xbf16>, vector<4x200xbf16>, vector<8x200xf32> -> vector<8x200xf32>
    %35 = arith.addf %30, %34 : vector<8x200xf32>
    %c7 = arith.constant 7 : index
    %c0_31 = arith.constant 0 : index
    %c0_32 = arith.constant 0 : index
    %36 = vector.load %arg1[%c7, %c0_31, %c0_32] : memref<9x8x4xbf16, #tpu.memory_space<vmem>>, vector<1x8x4xbf16>
    %37 = vector.shape_cast %36 : vector<1x8x4xbf16> to vector<8x4xbf16>
    %c0_33 = arith.constant 0 : index
    %c21 = arith.constant 21 : index
    %38 = vector.load %arg0[%c0_33, %c21] : memref<4x222xbf16, #tpu.memory_space<vmem>>, vector<4x200xbf16>
    %cst_34 = arith.constant dense<0.000000e+00> : vector<8x200xf32>
    %39 = tpu.matmul %37, %38, %cst_34 {dimension_numbers = #tpu.dot_dimension_numbers<[1], [0], [0], [1], [0, 0, 1, 1], [], []>} : vector<8x4xbf16>, vector<4x200xbf16>, vector<8x200xf32> -> vector<8x200xf32>
    %40 = arith.addf %35, %39 : vector<8x200xf32>
    %c8 = arith.constant 8 : index
    %c0_35 = arith.constant 0 : index
    %c0_36 = arith.constant 0 : index
    %41 = vector.load %arg1[%c8, %c0_35, %c0_36] : memref<9x8x4xbf16, #tpu.memory_space<vmem>>, vector<1x8x4xbf16>
    %42 = vector.shape_cast %41 : vector<1x8x4xbf16> to vector<8x4xbf16>
    %c0_37 = arith.constant 0 : index
    %c22 = arith.constant 22 : index
    %43 = vector.load %arg0[%c0_37, %c22] : memref<4x222xbf16, #tpu.memory_space<vmem>>, vector<4x200xbf16>
    %cst_38 = arith.constant dense<0.000000e+00> : vector<8x200xf32>
    %44 = tpu.matmul %42, %43, %cst_38 {dimension_numbers = #tpu.dot_dimension_numbers<[1], [0], [0], [1], [0, 0, 1, 1], [], []>} : vector<8x4xbf16>, vector<4x200xbf16>, vector<8x200xf32> -> vector<8x200xf32>
    %45 = arith.addf %40, %44 : vector<8x200xf32>
    %c0_39 = arith.constant 0 : index
    %c0_40 = arith.constant 0 : index
    %46 = vector.load %arg2[%c0_39, %c0_40] : memref<1x200xf32, #tpu.memory_space<vmem>>, vector<1x200xf32>
    %47 = vector.broadcast %46 : vector<1x200xf32> to vector<8x200xf32>
    %48 = arith.mulf %45, %47 : vector<8x200xf32>
    %cst_41 = arith.constant dense<0.000000e+00> : vector<8xf32>
    %49 = vector.multi_reduction <add>, %48, %cst_41 [1] : vector<8x200xf32> to vector<8xf32>
    %50 = vector.shape_cast %49 : vector<8xf32> to vector<8x1xf32>
    %cst_42 = arith.constant 7.812500e-03 : f32
    %51 = vector.broadcast %cst_42 : f32 to vector<8x1xf32>
    %52 = arith.mulf %50, %51 : vector<8x1xf32>
    %53 = vector.broadcast %52 : vector<8x1xf32> to vector<8x200xf32>
    %54 = arith.subf %45, %53 : vector<8x200xf32>
    %55 = vector.broadcast %46 : vector<1x200xf32> to vector<8x200xf32>
    %56 = arith.mulf %54, %55 : vector<8x200xf32>
    %57 = arith.mulf %56, %56 : vector<8x200xf32>
    %cst_43 = arith.constant dense<0.000000e+00> : vector<8xf32>
    %58 = vector.multi_reduction <add>, %57, %cst_43 [1] : vector<8x200xf32> to vector<8xf32>
    %59 = vector.shape_cast %58 : vector<8xf32> to vector<8x1xf32>
    %cst_44 = arith.constant 7.812500e-03 : f32
    %60 = vector.broadcast %cst_44 : f32 to vector<8x1xf32>
    %61 = arith.mulf %59, %60 : vector<8x1xf32>
    %c0_45 = arith.constant 0 : index
    %c0_46 = arith.constant 0 : index
    %62 = vector.load %arg3[%c0_45, %c0_46] : memref<8x1xf32, #tpu.memory_space<vmem>>, vector<8x1xf32>
    %cst_47 = arith.constant 9.99999974E-6 : f32
    %63 = vector.broadcast %cst_47 : f32 to vector<8x1xf32>
    %64 = arith.addf %61, %63 : vector<8x1xf32>
    %65 = math.rsqrt %64 : vector<8x1xf32>
    %66 = arith.mulf %62, %65 : vector<8x1xf32>
    %c0_48 = arith.constant 0 : index
    %c0_49 = arith.constant 0 : index
    %67 = vector.load %arg4[%c0_48, %c0_49] : memref<8x1xf32, #tpu.memory_space<vmem>>, vector<8x1xf32>
    %68 = arith.mulf %52, %66 : vector<8x1xf32>
    %69 = arith.subf %67, %68 : vector<8x1xf32>
    %70 = vector.broadcast %66 : vector<8x1xf32> to vector<8x200xf32>
    %71 = arith.mulf %45, %70 : vector<8x200xf32>
    %72 = vector.broadcast %69 : vector<8x1xf32> to vector<8x200xf32>
    %73 = arith.addf %71, %72 : vector<8x200xf32>
    %cst_50 = arith.constant 0.000000e+00 : f32
    %74 = vector.broadcast %cst_50 : f32 to vector<8x200xf32>
    %75 = arith.cmpf oge, %73, %74 : vector<8x200xf32>
    %cst_51 = arith.constant 2.000000e-01 : f32
    %76 = vector.broadcast %cst_51 : f32 to vector<8x200xf32>
    %77 = arith.mulf %76, %73 : vector<8x200xf32>
    %78 = arith.select %75, %73, %77 : vector<8x200xi1>, vector<8x200xf32>
    %c0_52 = arith.constant 0 : index
    %c0_53 = arith.constant 0 : index
    %79 = vector.load %arg5[%c0_52, %c0_53] : memref<8x200xf32, #tpu.memory_space<vmem>>, vector<8x200xf32>
    tpu.vector_store %arg5[%c0_52, %c0_53], %78 {strides = array<i32>} : memref<8x200xf32, #tpu.memory_space<vmem>>, vector<8x200xf32>,
    return
  }
}

</mosaic_0001>

<llo_original>
// kernel: tile.5
$region0: #{tile.5}
  %s0 = inlined_call_operand.vmem [shape: f32[10,10], index: 0, kind: input, shape index: {}]
  %s1 = inlined_call_operand.vmem [shape: f32[100], index: 1, kind: output, shape index: {}]
  $region1: #{tile.5} parent=0
    #allocation0 [shape = 'u8[4096]{0}', space=vmem, size = 0x1000, scoped, tag = 'scoped mem for output reshape']
    %v2 = vld [vmem:[%s0] sm:$0x1]
    %vm3 = vcmask 80896
    %4 = vst.msk [vmem:[#allocation0] sm:$0x1] %vm3, %v2
    %s5 = scalar_lea.vmem %s0, 9
    %v6 = vld [vmem:[%s5] sm:$0x1]
    %7 = vrot.lane.b32.xlu0 %v6, 90
    %v8 = vpop.permute.xlu0 %7
    %vm9 = vcmask 818896
    %10 = vst.msk [vmem:[#allocation0] sm:$0x1] %vm9, %v8
    %s11 = scalar_lea.vmem %s0, 8
    %v12 = vld [vmem:[%s11] sm:$0x1]
    %13 = vrot.lane.b32.xlu0 %v12, 80
    %v14 = vpop.permute.xlu0 %13
    %vm15 = vcmask 736896
    %16 = vst.msk [vmem:[#allocation0] sm:$0x1] %vm15, %v14
    %s17 = scalar_lea.vmem %s0, 7
    %v18 = vld [vmem:[%s17] sm:$0x1]
    %19 = vrot.lane.b32.xlu0 %v18, 70
    %v20 = vpop.permute.xlu0 %19
    %vm21 = vcmask 654896
    %22 = vst.msk [vmem:[#allocation0] sm:$0x1] %vm21, %v20
    %s23 = scalar_lea.vmem %s0, 6
    %v24 = vld [vmem:[%s23] sm:$0x1]
    %25 = vrot.lane.b32.xlu0 %v24, 60
    %v26 = vpop.permute.xlu0 %25
    %vm27 = vcmask 572896
    %28 = vst.msk [vmem:[#allocation0] sm:$0x1] %vm27, %v26
    %s29 = scalar_lea.vmem %s0, 5
    %v30 = vld [vmem:[%s29] sm:$0x1]
    %31 = vrot.lane.b32.xlu0 %v30, 50
    %v32 = vpop.permute.xlu0 %31
    %vm33 = vcmask 490896
    %34 = vst.msk [vmem:[#allocation0] sm:$0x1] %vm33, %v32
    %s35 = scalar_lea.vmem %s0, 4
    %v36 = vld [vmem:[%s35] sm:$0x1]
    %37 = vrot.lane.b32.xlu0 %v36, 40
    %v38 = vpop.permute.xlu0 %37
    %vm39 = vcmask 408896
    %40 = vst.msk [vmem:[#allocation0] sm:$0x1] %vm39, %v38
    %s41 = scalar_lea.vmem %s0, 3
    %v42 = vld [vmem:[%s41] sm:$0x1]
    %43 = vrot.lane.b32.xlu0 %v42, 30
    %v44 = vpop.permute.xlu0 %43
    %vm45 = vcmask 326896
    %46 = vst.msk [vmem:[#allocation0] sm:$0x1] %vm45, %v44
    %s47 = scalar_lea.vmem %s0, 2
    %v48 = vld [vmem:[%s47] sm:$0x1]
    %49 = vrot.lane.b32.xlu0 %v48, 20
    %v50 = vpop.permute.xlu0 %49
    %vm51 = vcmask 244896
    %52 = vst.msk [vmem:[#allocation0] sm:$0x1] %vm51, %v50
    %s53 = scalar_lea.vmem %s0, 1
    %v54 = vld [vmem:[%s53] sm:$0x1]
    %55 = vrot.lane.b32.xlu0 %v54, 10
    %v56 = vpop.permute.xlu0 %55
    %vm57 = vcmask 162896
    %58 = vst.msk [vmem:[#allocation0] sm:$0x1] %vm57, %v56
    %s60 = sshll.u32 1, 1
    %s61 = ssub.s32 %s60, 1
    %v63 = vld [vmem:[#allocation0] sm:%s61]
    %s64 = sshll.u32 1, 1
    %s65 = ssub.s32 %s64, 1
    %66 = vst [vmem:[%s1] sm:%s65] %v63

// kernel: tile.7
$region0: #{tile.7}
  %s0 = inlined_call_operand.vmem [shape: f32[2,100], index: 0, kind: input, shape index: {}]
  %s1 = inlined_call_operand.vmem [shape: f32[1,200], index: 1, kind: output, shape index: {}]
  $region1: #{tile.7} parent=0
    #allocation0 [shape = 'u8[8192]{0}', space=vmem, size = 0x2000, scoped, tag = 'scoped mem for output reshape']
    #allocation1 [shape = 'u8[4096]{0}', space=vmem, size = 0x1000, scoped, tag = 'scoped mem for input reshape']
    %s3 = sshll.u32 1, 2
    %s4 = ssub.s32 %s3, 1
    %v5 = vld [vmem:[%s0] sm:%s4]
    %6 = vst [vmem:[#allocation1] sm:%s4] %v5
    %v7 = vld [vmem:[#allocation1] sm:$0x1]
    %vm8 = vcmask 818176
    %9 = vst.msk [vmem:[#allocation0] sm:$0x1] %vm8, %v7
    %s10 = scalar_lea.vmem [#allocation1], 1
    %v11 = vld [vmem:[%s10] sm:$0x1]
    %s12 = scalar_lea.vmem [#allocation1], 1
    %v13 = vld [vmem:[%s12] sm:$0x1]
    %vm14 = vcmask 228352
    %v15 = vsel %vm14, %v13, %v11
    %16 = vrot.lane.b32.xlu0 %v15, 100
    %v17 = vpop.permute.xlu0 %16
    %vm18 = vcmask 588800
    %s19 = scalar_lea.vmem [#allocation0], 8
    %20 = vst.msk [vmem:[%s19] sm:$0x1] %vm18, %v17
    %vm21 = vcmask 1048352
    %22 = vst.msk [vmem:[#allocation0] sm:$0x1] %vm21, %v17
    %s24 = sshll.u32 1, 1
    %s25 = ssub.s32 %s24, 1
    %v27 = vld [vmem:[#allocation0] sm:%s25]
    %s28 = sshll.u32 1, 1
    %s29 = ssub.s32 %s28, 1
    %30 = vst [vmem:[%s1] sm:%s29] %v27
    %s31 = scalar_lea.vmem [#allocation0], 8
    %v32 = vld [vmem:[%s31] sm:%s25]
    %s33 = sshll.u32 1, 1
    %s34 = ssub.s32 %s33, 1
    %s35 = scalar_lea.vmem %s1, 1
    %36 = vst [vmem:[%s35] sm:%s34] %v32

// kernel: tile.6
$region0: #{tile.6}
  #allocation0 [shape = 's32[1]{0}', space=sflag, size = 0x4, scoped, tag = 'scoped memory for tile.6']
  %s0 = inlined_call_operand.vmem [shape: f32[100], index: 0, kind: input, shape index: {}]
  %s1 = inlined_call_operand.vmem [shape: f32[2,100], index: 1, kind: output, shape index: {}]
  // Predicated region
  $region2: #{tile.6} parent=0 // pred_check
    _
  $region3: #{tile.6} parent=0 // pred_check_branch
    %3 = sbr.rel (0) target = $region5
  $region4: #{tile.6} parent=0 // pred_region
    _
  $region5: #{tile.6} parent=0 // pred_fallthru
    _
  %v4 = vld [vmem:[%s0] ss:$0 sm:$0xff]
  %5 = vst [vmem:[%s1] sm:$0x3] %v4

// kernel: down_forward.1
$region0: #{down_forward.1}
  #allocation0 [shape = 'u32[]', space=smem, size = 0x4, offset = 0x4, fixed_abs, tag = 'smem constant byte address 0x4 - core index']
  #allocation1 [shape = 'u32[144,128]{1,0:T(1,128)}', space=vmem, size = 0x12000, scoped, tag = 'internal scratch']
  %s0 = inlined_call_operand.vmem [shape: bf16[4,222], index: 0, kind: input, shape index: {}]
  %s1 = inlined_call_operand.vmem [shape: bf16[9,8,4], index: 1, kind: input, shape index: {}]
  %s2 = inlined_call_operand.vmem [shape: f32[1,200], index: 2, kind: input, shape index: {}]
  %s3 = inlined_call_operand.vmem [shape: f32[8,1], index: 3, kind: input, shape index: {}]
  %s4 = inlined_call_operand.vmem [shape: f32[8,1], index: 4, kind: input, shape index: {}]
  %s5 = inlined_call_operand.vmem [shape: f32[8,200], index: 5, kind: output, shape index: {}]
  %s6 = sld [smem:[#allocation0]]
  $region30: #{down_forward.1} parent=0
    _
  %s8 = ssub.s32 1, %s6
  %s9 = scalar_select 0, %s8, %s6
  // Predicated region
  $region2: #{down_forward.1} parent=0 // pred_check
    _
  $region3: #{down_forward.1} parent=0 // pred_check_branch
    %11 = sbr.rel (0) target = $region5
  $region4: #{down_forward.1} parent=0 // pred_region
    _
  $region5: #{down_forward.1} parent=0 // pred_fallthru
    _
  // Predicated region
  $region6: #{down_forward.1} parent=0 // pred_check
    _
  $region7: #{down_forward.1} parent=0 // pred_check_branch
    %13 = sbr.rel (0) target = $region9
  $region8: #{down_forward.1} parent=0 // pred_region
    _
  $region9: #{down_forward.1} parent=0 // pred_fallthru
    _
  // Predicated region
  $region10: #{down_forward.1} parent=0 // pred_check
    _
  $region11: #{down_forward.1} parent=0 // pred_check_branch
    %15 = sbr.rel (0) target = $region13
  $region12: #{down_forward.1} parent=0 // pred_region
    _
  $region13: #{down_forward.1} parent=0 // pred_fallthru
    _
  // Predicated region
  $region14: #{down_forward.1} parent=0 // pred_check
    _
  $region15: #{down_forward.1} parent=0 // pred_check_branch
    %17 = sbr.rel (0) target = $region17
  $region16: #{down_forward.1} parent=0 // pred_region
    _
  $region17: #{down_forward.1} parent=0 // pred_fallthru
    _
  // Predicated region
  $region18: #{down_forward.1} parent=0 // pred_check
    _
  $region19: #{down_forward.1} parent=0 // pred_check_branch
    %19 = sbr.rel (0) target = $region21
  $region20: #{down_forward.1} parent=0 // pred_region
    _
  $region21: #{down_forward.1} parent=0 // pred_fallthru
    _
  %v21 = vld [vmem:[%s1] sm:$0xf]
  %v22 = vld [vmem:[%s0] sm:$0xf]
  %s23 = scalar_lea.vmem %s1, 4
  %v24 = vld [vmem:[%s23] sm:$0xf]
  %v27 = vunpack.c.l.s4 1983009808
  %v28 = vunpack.c.0.s8 %v27
  %v29 = vlaneseq
  %v30 = vshrl.u32 %v29, 7
  %v31 = vsub.s32 %v28, %v30
  %v32 = vrot.slane %v22, %v31
  %v33 = vcombine.high %v32, %v32
  %34 = vrot.lane.b32.xlu0 %v32, 127
  %v35 = vpop.permute.xlu0 %34
  %36 = vrot.lane.b32.xlu0 %v33, 127
  %v37 = vpop.permute.xlu0 %36
  %vm38 = vcmask 1039360
  %v39 = vsel %vm38, %v35, %v37
  %vm40 = vcmask 31744
  %v42 = vsel %vm40, %v24, 0
  %vm44 = vcmask 1041408
  %v46 = vsel %vm44, %v39, 0
  %v49 = vsel %vm44, %v37, 0
  %51 = vmatprep.subr.bf16.mxu0 0
  %52 = vmatpush1.bf16.msra.mxu0 0
  %53 = vmatprep.subr.bf16.mxu0 0
  %54 = vmatpush1.bf16.msra.mxu0 0
  %55 = vmatprep.subr.bf16.mxu0 0
  %56 = vmatpush1.bf16.msra.mxu0 0
  %57 = vmatprep.subr.bf16.mxu0 0
  %58 = vmatpush1.bf16.msra.mxu0 0
  %59 = vmatprep.subr.bf16.mxu0 0
  %60 = vmatpush1.bf16.msra.mxu0 0
  %61 = vmatprep.subr.bf16.mxu0 0
  %62 = vmatpush1.bf16.msra.mxu0 0
  %63 = vmatprep.subr.bf16.mxu0 0
  %64 = vmatpush1.bf16.msra.mxu0 0
  %65 = vmatprep.subr.bf16.mxu0 %v49
  %66 = vmatpush1.bf16.msra.mxu0 %v46
  %67 = vmatprep.subr.bf16.mxu0 0
  %68 = vmatpush2.bf16.msra.mxu0 0
  %69 = vmatprep.subr.bf16.mxu0 0
  %70 = vmatpush2.bf16.msra.mxu0 0
  %71 = vmatprep.subr.bf16.mxu0 0
  %72 = vmatpush2.bf16.msra.mxu0 0
  %73 = vmatprep.subr.bf16.mxu0 0
  %74 = vmatpush2.bf16.msra.mxu0 0
  %75 = vmatprep.subr.bf16.mxu0 0
  %76 = vmatpush2.bf16.msra.mxu0 0
  %77 = vmatprep.subr.bf16.mxu0 0
  %78 = vmatpush2.bf16.msra.mxu0 0
  %79 = vmatprep.subr.bf16.mxu0 0
  %80 = vmatpush2.bf16.msra.mxu0 0
  %81 = vmatprep.subr.bf16.mxu0 0
  %82 = vmatpush2.bf16.msra.mxu0 0
  %83 = vmatprep.mubr.bf16.mxu0 0
  %84 = vmatmul.mubr.bf16.gmra.mxu0 %v42
  %v85 = vpop.f32.mrf.mxu0
  %v86 = vadd.f32 0.0, %v85
  %v87 = vpop.f32.mrf.mxu0
  %v88 = vadd.f32 0.0, %v87
  %v89 = vpop.f32.mrf.mxu0
  %v90 = vpop.f32.mrf.mxu0
  %91 = vdwg.mxu0
  %v93 = vsel %vm40, %v21, 0
  %v96 = vsel %vm44, %v32, 0
  %v99 = vsel %vm44, %v33, 0
  %101 = vmatprep.subr.bf16.mxu0 0
  %102 = vmatpush1.bf16.msra.mxu0 0
  %103 = vmatprep.subr.bf16.mxu0 0
  %104 = vmatpush1.bf16.msra.mxu0 0
  %105 = vmatprep.subr.bf16.mxu0 0
  %106 = vmatpush1.bf16.msra.mxu0 0
  %107 = vmatprep.subr.bf16.mxu0 0
  %108 = vmatpush1.bf16.msra.mxu0 0
  %109 = vmatprep.subr.bf16.mxu0 0
  %110 = vmatpush1.bf16.msra.mxu0 0
  %111 = vmatprep.subr.bf16.mxu0 0
  %112 = vmatpush1.bf16.msra.mxu0 0
  %113 = vmatprep.subr.bf16.mxu0 0
  %114 = vmatpush1.bf16.msra.mxu0 0
  %115 = vmatprep.subr.bf16.mxu0 %v99
  %116 = vmatpush1.bf16.msra.mxu0 %v96
  %117 = vmatprep.subr.bf16.mxu0 0
  %118 = vmatpush2.bf16.msra.mxu0 0
  %119 = vmatprep.subr.bf16.mxu0 0
  %120 = vmatpush2.bf16.msra.mxu0 0
  %121 = vmatprep.subr.bf16.mxu0 0
  %122 = vmatpush2.bf16.msra.mxu0 0
  %123 = vmatprep.subr.bf16.mxu0 0
  %124 = vmatpush2.bf16.msra.mxu0 0
  %125 = vmatprep.subr.bf16.mxu0 0
  %126 = vmatpush2.bf16.msra.mxu0 0
  %127 = vmatprep.subr.bf16.mxu0 0
  %128 = vmatpush2.bf16.msra.mxu0 0
  %129 = vmatprep.subr.bf16.mxu0 0
  %130 = vmatpush2.bf16.msra.mxu0 0
  %131 = vmatprep.subr.bf16.mxu0 0
  %132 = vmatpush2.bf16.msra.mxu0 0
  %133 = vmatprep.mubr.bf16.mxu0 0
  %134 = vmatmul.mubr.bf16.gmra.mxu0 %v93
  %v135 = vpop.f32.mrf.mxu0
  %v136 = vadd.f32 %v86, %v135
  %v137 = vpop.f32.mrf.mxu0
  %v138 = vadd.f32 %v88, %v137
  %v139 = vpop.f32.mrf.mxu0
  %v140 = vpop.f32.mrf.mxu0
  %141 = vdwg.mxu0
  %s142 = scalar_lea.vmem %s1, 8
  %v143 = vld [vmem:[%s142] sm:$0xf]
  %v144 = vld [vmem:[%s0] sm:$0xf]
  %v147 = vunpack.c.l.s4 1983009808
  %v148 = vunpack.c.0.s8 %v147
  %v149 = vlaneseq
  %v150 = vshrl.u32 %v149, 7
  %v151 = vsub.s32 %v148, %v150
  %v152 = vrot.slane %v144, %v151
  %v153 = vcombine.high %v152, %v152
  %154 = vrot.lane.b32.xlu0 %v152, 126
  %v155 = vpop.permute.xlu0 %154
  %156 = vrot.lane.b32.xlu0 %v153, 126
  %v157 = vpop.permute.xlu0 %156
  %vm158 = vcmask 1031168
  %v159 = vsel %vm158, %v155, %v157
  %v161 = vsel %vm40, %v143, 0
  %v164 = vsel %vm44, %v159, 0
  %v167 = vsel %vm44, %v157, 0
  %169 = vmatprep.subr.bf16.mxu0 0
  %170 = vmatpush1.bf16.msra.mxu0 0
  %171 = vmatprep.subr.bf16.mxu0 0
  %172 = vmatpush1.bf16.msra.mxu0 0
  %173 = vmatprep.subr.bf16.mxu0 0
  %174 = vmatpush1.bf16.msra.mxu0 0
  %175 = vmatprep.subr.bf16.mxu0 0
  %176 = vmatpush1.bf16.msra.mxu0 0
  %177 = vmatprep.subr.bf16.mxu0 0
  %178 = vmatpush1.bf16.msra.mxu0 0
  %179 = vmatprep.subr.bf16.mxu0 0
  %180 = vmatpush1.bf16.msra.mxu0 0
  %181 = vmatprep.subr.bf16.mxu0 0
  %182 = vmatpush1.bf16.msra.mxu0 0
  %183 = vmatprep.subr.bf16.mxu0 %v167
  %184 = vmatpush1.bf16.msra.mxu0 %v164
  %185 = vmatprep.subr.bf16.mxu0 0
  %186 = vmatpush2.bf16.msra.mxu0 0
  %187 = vmatprep.subr.bf16.mxu0 0
  %188 = vmatpush2.bf16.msra.mxu0 0
  %189 = vmatprep.subr.bf16.mxu0 0
  %190 = vmatpush2.bf16.msra.mxu0 0
  %191 = vmatprep.subr.bf16.mxu0 0
  %192 = vmatpush2.bf16.msra.mxu0 0
  %193 = vmatprep.subr.bf16.mxu0 0
  %194 = vmatpush2.bf16.msra.mxu0 0
  %195 = vmatprep.subr.bf16.mxu0 0
  %196 = vmatpush2.bf16.msra.mxu0 0
  %197 = vmatprep.subr.bf16.mxu0 0
  %198 = vmatpush2.bf16.msra.mxu0 0
  %199 = vmatprep.subr.bf16.mxu0 0
  %200 = vmatpush2.bf16.msra.mxu0 0
  %201 = vmatprep.mubr.bf16.mxu0 0
  %202 = vmatmul.mubr.bf16.gmra.mxu0 %v161
  %v203 = vpop.f32.mrf.mxu0
  %v204 = vadd.f32 0.0, %v203
  %v205 = vpop.f32.mrf.mxu0
  %v206 = vadd.f32 0.0, %v205
  %v207 = vpop.f32.mrf.mxu0
  %v208 = vpop.f32.mrf.mxu0
  %209 = vdwg.mxu0
  %v210 = vadd.f32 %v136, %v204
  %v211 = vadd.f32 %v138, %v206
  %s212 = scalar_lea.vmem %s1, 12
  %v213 = vld [vmem:[%s212] sm:$0xf]
  %v214 = vld [vmem:[%s0] sm:$0xf]
  %v217 = vunpack.c.l.s4 1983009808
  %v218 = vunpack.c.0.s8 %v217
  %v219 = vlaneseq
  %v220 = vshrl.u32 %v219, 7
  %v221 = vsub.s32 %v218, %v220
  %v222 = vrot.slane %v214, %v221
  %v223 = vcombine.high %v222, %v222
  %224 = vrot.lane.b32.xlu0 %v222, 118
  %v225 = vpop.permute.xlu0 %224
  %226 = vrot.lane.b32.xlu0 %v223, 118
  %v227 = vpop.permute.xlu0 %226
  %vm228 = vcmask 965632
  %v229 = vsel %vm228, %v225, %v227
  %v231 = vsel %vm40, %v213, 0
  %v234 = vsel %vm44, %v229, 0
  %v237 = vsel %vm44, %v227, 0
  %239 = vmatprep.subr.bf16.mxu0 0
  %240 = vmatpush1.bf16.msra.mxu0 0
  %241 = vmatprep.subr.bf16.mxu0 0
  %242 = vmatpush1.bf16.msra.mxu0 0
  %243 = vmatprep.subr.bf16.mxu0 0
  %244 = vmatpush1.bf16.msra.mxu0 0
  %245 = vmatprep.subr.bf16.mxu0 0
  %246 = vmatpush1.bf16.msra.mxu0 0
  %247 = vmatprep.subr.bf16.mxu0 0
  %248 = vmatpush1.bf16.msra.mxu0 0
  %249 = vmatprep.subr.bf16.mxu0 0
  %250 = vmatpush1.bf16.msra.mxu0 0
  %251 = vmatprep.subr.bf16.mxu0 0
  %252 = vmatpush1.bf16.msra.mxu0 0
  %253 = vmatprep.subr.bf16.mxu0 %v237
  %254 = vmatpush1.bf16.msra.mxu0 %v234
  %255 = vmatprep.subr.bf16.mxu0 0
  %256 = vmatpush2.bf16.msra.mxu0 0
  %257 = vmatprep.subr.bf16.mxu0 0
  %258 = vmatpush2.bf16.msra.mxu0 0
  %259 = vmatprep.subr.bf16.mxu0 0
  %260 = vmatpush2.bf16.msra.mxu0 0
  %261 = vmatprep.subr.bf16.mxu0 0
  %262 = vmatpush2.bf16.msra.mxu0 0
  %263 = vmatprep.subr.bf16.mxu0 0
  %264 = vmatpush2.bf16.msra.mxu0 0
  %265 = vmatprep.subr.bf16.mxu0 0
  %266 = vmatpush2.bf16.msra.mxu0 0
  %267 = vmatprep.subr.bf16.mxu0 0
  %268 = vmatpush2.bf16.msra.mxu0 0
  %269 = vmatprep.subr.bf16.mxu0 0
  %270 = vmatpush2.bf16.msra.mxu0 0
  %271 = vmatprep.mubr.bf16.mxu0 0
  %272 = vmatmul.mubr.bf16.gmra.mxu0 %v231
  %v273 = vpop.f32.mrf.mxu0
  %v274 = vadd.f32 0.0, %v273
  %v275 = vpop.f32.mrf.mxu0
  %v276 = vadd.f32 0.0, %v275
  %v277 = vpop.f32.mrf.mxu0
  %v278 = vpop.f32.mrf.mxu0
  %279 = vdwg.mxu0
  %v280 = vadd.f32 %v210, %v274
  %v281 = vadd.f32 %v211, %v276
  %s282 = scalar_lea.vmem %s1, 16
  %v283 = vld [vmem:[%s282] sm:$0xf]
  %v284 = vld [vmem:[%s0] sm:$0xf]
  %v287 = vunpack.c.l.s4 1983009808
  %v288 = vunpack.c.0.s8 %v287
  %v289 = vlaneseq
  %v290 = vshrl.u32 %v289, 7
  %v291 = vsub.s32 %v288, %v290
  %v292 = vrot.slane %v284, %v291
  %v293 = vcombine.high %v292, %v292
  %294 = vrot.lane.b32.xlu0 %v292, 117
  %v295 = vpop.permute.xlu0 %294
  %296 = vrot.lane.b32.xlu0 %v293, 117
  %v297 = vpop.permute.xlu0 %296
  %vm298 = vcmask 957440
  %v299 = vsel %vm298, %v295, %v297
  %v301 = vsel %vm40, %v283, 0
  %v304 = vsel %vm44, %v299, 0
  %v307 = vsel %vm44, %v297, 0
  %309 = vmatprep.subr.bf16.mxu0 0
  %310 = vmatpush1.bf16.msra.mxu0 0
  %311 = vmatprep.subr.bf16.mxu0 0
  %312 = vmatpush1.bf16.msra.mxu0 0
  %313 = vmatprep.subr.bf16.mxu0 0
  %314 = vmatpush1.bf16.msra.mxu0 0
  %315 = vmatprep.subr.bf16.mxu0 0
  %316 = vmatpush1.bf16.msra.mxu0 0
  %317 = vmatprep.subr.bf16.mxu0 0
  %318 = vmatpush1.bf16.msra.mxu0 0
  %319 = vmatprep.subr.bf16.mxu0 0
  %320 = vmatpush1.bf16.msra.mxu0 0
  %321 = vmatprep.subr.bf16.mxu0 0
  %322 = vmatpush1.bf16.msra.mxu0 0
  %323 = vmatprep.subr.bf16.mxu0 %v307
  %324 = vmatpush1.bf16.msra.mxu0 %v304
  %325 = vmatprep.subr.bf16.mxu0 0
  %326 = vmatpush2.bf16.msra.mxu0 0
  %327 = vmatprep.subr.bf16.mxu0 0
  %328 = vmatpush2.bf16.msra.mxu0 0
  %329 = vmatprep.subr.bf16.mxu0 0
  %330 = vmatpush2.bf16.msra.mxu0 0
  %331 = vmatprep.subr.bf16.mxu0 0
  %332 = vmatpush2.bf16.msra.mxu0 0
  %333 = vmatprep.subr.bf16.mxu0 0
  %334 = vmatpush2.bf16.msra.mxu0 0
  %335 = vmatprep.subr.bf16.mxu0 0
  %336 = vmatpush2.bf16.msra.mxu0 0
  %337 = vmatprep.subr.bf16.mxu0 0
  %338 = vmatpush2.bf16.msra.mxu0 0
  %339 = vmatprep.subr.bf16.mxu0 0
  %340 = vmatpush2.bf16.msra.mxu0 0
  %341 = vmatprep.mubr.bf16.mxu0 0
  %342 = vmatmul.mubr.bf16.gmra.mxu0 %v301
  %v343 = vpop.f32.mrf.mxu0
  %v344 = vadd.f32 0.0, %v343
  %v345 = vpop.f32.mrf.mxu0
  %v346 = vadd.f32 0.0, %v345
  %v347 = vpop.f32.mrf.mxu0
  %v348 = vpop.f32.mrf.mxu0
  %349 = vdwg.mxu0
  %v350 = vadd.f32 %v280, %v344
  %v351 = vadd.f32 %v281, %v346
  %s352 = scalar_lea.vmem %s1, 20
  %v353 = vld [vmem:[%s352] sm:$0xf]
  %v354 = vld [vmem:[%s0] sm:$0xf]
  %v357 = vunpack.c.l.s4 1983009808
  %v358 = vunpack.c.0.s8 %v357
  %v359 = vlaneseq
  %v360 = vshrl.u32 %v359, 7
  %v361 = vsub.s32 %v358, %v360
  %v362 = vrot.slane %v354, %v361
  %v363 = vcombine.high %v362, %v362
  %364 = vrot.lane.b32.xlu0 %v362, 116
  %v365 = vpop.permute.xlu0 %364
  %366 = vrot.lane.b32.xlu0 %v363, 116
  %v367 = vpop.permute.xlu0 %366
  %vm368 = vcmask 949248
  %v369 = vsel %vm368, %v365, %v367
  %v371 = vsel %vm40, %v353, 0
  %v374 = vsel %vm44, %v369, 0
  %v377 = vsel %vm44, %v367, 0
  %379 = vmatprep.subr.bf16.mxu0 0
  %380 = vmatpush1.bf16.msra.mxu0 0
  %381 = vmatprep.subr.bf16.mxu0 0
  %382 = vmatpush1.bf16.msra.mxu0 0
  %383 = vmatprep.subr.bf16.mxu0 0
  %384 = vmatpush1.bf16.msra.mxu0 0
  %385 = vmatprep.subr.bf16.mxu0 0
  %386 = vmatpush1.bf16.msra.mxu0 0
  %387 = vmatprep.subr.bf16.mxu0 0
  %388 = vmatpush1.bf16.msra.mxu0 0
  %389 = vmatprep.subr.bf16.mxu0 0
  %390 = vmatpush1.bf16.msra.mxu0 0
  %391 = vmatprep.subr.bf16.mxu0 0
  %392 = vmatpush1.bf16.msra.mxu0 0
  %393 = vmatprep.subr.bf16.mxu0 %v377
  %394 = vmatpush1.bf16.msra.mxu0 %v374
  %395 = vmatprep.subr.bf16.mxu0 0
  %396 = vmatpush2.bf16.msra.mxu0 0
  %397 = vmatprep.subr.bf16.mxu0 0
  %398 = vmatpush2.bf16.msra.mxu0 0
  %399 = vmatprep.subr.bf16.mxu0 0
  %400 = vmatpush2.bf16.msra.mxu0 0
  %401 = vmatprep.subr.bf16.mxu0 0
  %402 = vmatpush2.bf16.msra.mxu0 0
  %403 = vmatprep.subr.bf16.mxu0 0
  %404 = vmatpush2.bf16.msra.mxu0 0
  %405 = vmatprep.subr.bf16.mxu0 0
  %406 = vmatpush2.bf16.msra.mxu0 0
  %407 = vmatprep.subr.bf16.mxu0 0
  %408 = vmatpush2.bf16.msra.mxu0 0
  %409 = vmatprep.subr.bf16.mxu0 0
  %410 = vmatpush2.bf16.msra.mxu0 0
  %411 = vmatprep.mubr.bf16.mxu0 0
  %412 = vmatmul.mubr.bf16.gmra.mxu0 %v371
  %v413 = vpop.f32.mrf.mxu0
  %v414 = vadd.f32 0.0, %v413
  %v415 = vpop.f32.mrf.mxu0
  %v416 = vadd.f32 0.0, %v415
  %v417 = vpop.f32.mrf.mxu0
  %v418 = vpop.f32.mrf.mxu0
  %419 = vdwg.mxu0
  %v420 = vadd.f32 %v350, %v414
  %v421 = vadd.f32 %v351, %v416
  %s422 = scalar_lea.vmem %s1, 24
  %v423 = vld [vmem:[%s422] sm:$0xf]
  %v424 = vld [vmem:[%s0] sm:$0xf]
  %v427 = vunpack.c.l.s4 1983009808
  %v428 = vunpack.c.0.s8 %v427
  %v429 = vlaneseq
  %v430 = vshrl.u32 %v429, 7
  %v431 = vsub.s32 %v428, %v430
  %v432 = vrot.slane %v424, %v431
  %v433 = vcombine.high %v432, %v432
  %434 = vrot.lane.b32.xlu0 %v432, 108
  %v435 = vpop.permute.xlu0 %434
  %436 = vrot.lane.b32.xlu0 %v433, 108
  %v437 = vpop.permute.xlu0 %436
  %vm438 = vcmask 883712
  %v439 = vsel %vm438, %v435, %v437
  %v441 = vsel %vm40, %v423, 0
  %v444 = vsel %vm44, %v439, 0
  %v447 = vsel %vm44, %v437, 0
  %449 = vmatprep.subr.bf16.mxu0 0
  %450 = vmatpush1.bf16.msra.mxu0 0
  %451 = vmatprep.subr.bf16.mxu0 0
  %452 = vmatpush1.bf16.msra.mxu0 0
  %453 = vmatprep.subr.bf16.mxu0 0
  %454 = vmatpush1.bf16.msra.mxu0 0
  %455 = vmatprep.subr.bf16.mxu0 0
  %456 = vmatpush1.bf16.msra.mxu0 0
  %457 = vmatprep.subr.bf16.mxu0 0
  %458 = vmatpush1.bf16.msra.mxu0 0
  %459 = vmatprep.subr.bf16.mxu0 0
  %460 = vmatpush1.bf16.msra.mxu0 0
  %461 = vmatprep.subr.bf16.mxu0 0
  %462 = vmatpush1.bf16.msra.mxu0 0
  %463 = vmatprep.subr.bf16.mxu0 %v447
  %464 = vmatpush1.bf16.msra.mxu0 %v444
  %465 = vmatprep.subr.bf16.mxu0 0
  %466 = vmatpush2.bf16.msra.mxu0 0
  %467 = vmatprep.subr.bf16.mxu0 0
  %468 = vmatpush2.bf16.msra.mxu0 0
  %469 = vmatprep.subr.bf16.mxu0 0
  %470 = vmatpush2.bf16.msra.mxu0 0
  %471 = vmatprep.subr.bf16.mxu0 0
  %472 = vmatpush2.bf16.msra.mxu0 0
  %473 = vmatprep.subr.bf16.mxu0 0
  %474 = vmatpush2.bf16.msra.mxu0 0
  %475 = vmatprep.subr.bf16.mxu0 0
  %476 = vmatpush2.bf16.msra.mxu0 0
  %477 = vmatprep.subr.bf16.mxu0 0
  %478 = vmatpush2.bf16.msra.mxu0 0
  %479 = vmatprep.subr.bf16.mxu0 0
  %480 = vmatpush2.bf16.msra.mxu0 0
  %481 = vmatprep.mubr.bf16.mxu0 0
  %482 = vmatmul.mubr.bf16.gmra.mxu0 %v441
  %v483 = vpop.f32.mrf.mxu0
  %v484 = vadd.f32 0.0, %v483
  %v485 = vpop.f32.mrf.mxu0
  %v486 = vadd.f32 0.0, %v485
  %v487 = vpop.f32.mrf.mxu0
  %v488 = vpop.f32.mrf.mxu0
  %489 = vdwg.mxu0
  %v490 = vadd.f32 %v420, %v484
  %v491 = vadd.f32 %v421, %v486
  %s492 = scalar_lea.vmem %s1, 28
  %v493 = vld [vmem:[%s492] sm:$0xf]
  %v494 = vld [vmem:[%s0] sm:$0xf]
  %v497 = vunpack.c.l.s4 1983009808
  %v498 = vunpack.c.0.s8 %v497
  %v499 = vlaneseq
  %v500 = vshrl.u32 %v499, 7
  %v501 = vsub.s32 %v498, %v500
  %v502 = vrot.slane %v494, %v501
  %v503 = vcombine.high %v502, %v502
  %504 = vrot.lane.b32.xlu0 %v502, 107
  %v505 = vpop.permute.xlu0 %504
  %506 = vrot.lane.b32.xlu0 %v503, 107
  %v507 = vpop.permute.xlu0 %506
  %vm508 = vcmask 875520
  %v509 = vsel %vm508, %v505, %v507
  %v511 = vsel %vm40, %v493, 0
  %v514 = vsel %vm44, %v509, 0
  %v517 = vsel %vm44, %v507, 0
  %519 = vmatprep.subr.bf16.mxu0 0
  %520 = vmatpush1.bf16.msra.mxu0 0
  %521 = vmatprep.subr.bf16.mxu0 0
  %522 = vmatpush1.bf16.msra.mxu0 0
  %523 = vmatprep.subr.bf16.mxu0 0
  %524 = vmatpush1.bf16.msra.mxu0 0
  %525 = vmatprep.subr.bf16.mxu0 0
  %526 = vmatpush1.bf16.msra.mxu0 0
  %527 = vmatprep.subr.bf16.mxu0 0
  %528 = vmatpush1.bf16.msra.mxu0 0
  %529 = vmatprep.subr.bf16.mxu0 0
  %530 = vmatpush1.bf16.msra.mxu0 0
  %531 = vmatprep.subr.bf16.mxu0 0
  %532 = vmatpush1.bf16.msra.mxu0 0
  %533 = vmatprep.subr.bf16.mxu0 %v517
  %534 = vmatpush1.bf16.msra.mxu0 %v514
  %535 = vmatprep.subr.bf16.mxu0 0
  %536 = vmatpush2.bf16.msra.mxu0 0
  %537 = vmatprep.subr.bf16.mxu0 0
  %538 = vmatpush2.bf16.msra.mxu0 0
  %539 = vmatprep.subr.bf16.mxu0 0
  %540 = vmatpush2.bf16.msra.mxu0 0
  %541 = vmatprep.subr.bf16.mxu0 0
  %542 = vmatpush2.bf16.msra.mxu0 0
  %543 = vmatprep.subr.bf16.mxu0 0
  %544 = vmatpush2.bf16.msra.mxu0 0
  %545 = vmatprep.subr.bf16.mxu0 0
  %546 = vmatpush2.bf16.msra.mxu0 0
  %547 = vmatprep.subr.bf16.mxu0 0
  %548 = vmatpush2.bf16.msra.mxu0 0
  %549 = vmatprep.subr.bf16.mxu0 0
  %550 = vmatpush2.bf16.msra.mxu0 0
  %551 = vmatprep.mubr.bf16.mxu0 0
  %552 = vmatmul.mubr.bf16.gmra.mxu0 %v511
  %v553 = vpop.f32.mrf.mxu0
  %v554 = vadd.f32 0.0, %v553
  %v555 = vpop.f32.mrf.mxu0
  %v556 = vadd.f32 0.0, %v555
  %v557 = vpop.f32.mrf.mxu0
  %v558 = vpop.f32.mrf.mxu0
  %559 = vdwg.mxu0
  %v560 = vadd.f32 %v490, %v554
  %v561 = vadd.f32 %v491, %v556
  %s562 = scalar_lea.vmem %s1, 32
  %v563 = vld [vmem:[%s562] sm:$0xf]
  %v564 = vld [vmem:[%s0] sm:$0xf]
  %v567 = vunpack.c.l.s4 1983009808
  %v568 = vunpack.c.0.s8 %v567
  %v569 = vlaneseq
  %v570 = vshrl.u32 %v569, 7
  %v571 = vsub.s32 %v568, %v570
  %v572 = vrot.slane %v564, %v571
  %v573 = vcombine.high %v572, %v572
  %574 = vrot.lane.b32.xlu0 %v572, 106
  %v575 = vpop.permute.xlu0 %574
  %576 = vrot.lane.b32.xlu0 %v573, 106
  %v577 = vpop.permute.xlu0 %576
  %vm578 = vcmask 867328
  %v579 = vsel %vm578, %v575, %v577
  %v581 = vsel %vm40, %v563, 0
  %v584 = vsel %vm44, %v579, 0
  %v587 = vsel %vm44, %v577, 0
  %589 = vmatprep.subr.bf16.mxu0 0
  %590 = vmatpush1.bf16.msra.mxu0 0
  %591 = vmatprep.subr.bf16.mxu0 0
  %592 = vmatpush1.bf16.msra.mxu0 0
  %593 = vmatprep.subr.bf16.mxu0 0
  %594 = vmatpush1.bf16.msra.mxu0 0
  %595 = vmatprep.subr.bf16.mxu0 0
  %596 = vmatpush1.bf16.msra.mxu0 0
  %597 = vmatprep.subr.bf16.mxu0 0
  %598 = vmatpush1.bf16.msra.mxu0 0
  %599 = vmatprep.subr.bf16.mxu0 0
  %600 = vmatpush1.bf16.msra.mxu0 0
  %601 = vmatprep.subr.bf16.mxu0 0
  %602 = vmatpush1.bf16.msra.mxu0 0
  %603 = vmatprep.subr.bf16.mxu0 %v587
  %604 = vmatpush1.bf16.msra.mxu0 %v584
  %605 = vmatprep.subr.bf16.mxu0 0
  %606 = vmatpush2.bf16.msra.mxu0 0
  %607 = vmatprep.subr.bf16.mxu0 0
  %608 = vmatpush2.bf16.msra.mxu0 0
  %609 = vmatprep.subr.bf16.mxu0 0
  %610 = vmatpush2.bf16.msra.mxu0 0
  %611 = vmatprep.subr.bf16.mxu0 0
  %612 = vmatpush2.bf16.msra.mxu0 0
  %613 = vmatprep.subr.bf16.mxu0 0
  %614 = vmatpush2.bf16.msra.mxu0 0
  %615 = vmatprep.subr.bf16.mxu0 0
  %616 = vmatpush2.bf16.msra.mxu0 0
  %617 = vmatprep.subr.bf16.mxu0 0
  %618 = vmatpush2.bf16.msra.mxu0 0
  %619 = vmatprep.subr.bf16.mxu0 0
  %620 = vmatpush2.bf16.msra.mxu0 0
  %621 = vmatprep.mubr.bf16.mxu0 0
  %622 = vmatmul.mubr.bf16.gmra.mxu0 %v581
  %v623 = vpop.f32.mrf.mxu0
  %v624 = vadd.f32 0.0, %v623
  %v625 = vpop.f32.mrf.mxu0
  %v626 = vadd.f32 0.0, %v625
  %v627 = vpop.f32.mrf.mxu0
  %v628 = vpop.f32.mrf.mxu0
  %629 = vdwg.mxu0
  %v630 = vadd.f32 %v560, %v624
  %v631 = vadd.f32 %v561, %v626
  %v632 = vld [vmem:[%s2] sm:$0x3]
  %v634 = vlaneseq
  %v635 = vshrl.u32 %v634, 7
  %v636 = vsub.s32 0, %v635
  %v637 = vrot.slane %v632, %v636
  %v638 = vlaneseq
  %v639 = vshrl.u32 %v638, 7
  %v640 = vsub.s32 1, %v639
  %v641 = vrot.slane %v632, %v640
  %v644 = vmul.f32 %v630, %v637
  %v645 = vmul.f32 %v631, %v641
  %vm646 = vcmask 588800
  %v647 = vsel %vm646, %v645, 0.0
  %v648 = vadd.f32 %v644, %v647
  %649 = vadd.xlane.f32.xlu0 %v648
  %v650 = vpop.xlane.xlu0 %649
  %v651 = vmul.f32 %v650, 0.0078125
  %v652 = vsub.f32 %v630, %v651
  %v653 = vsub.f32 %v631, %v651
  %v654 = vmul.f32 %v652, %v637
  %v655 = vmul.f32 %v653, %v641
  %v656 = vmul.f32 %v654, %v654
  %v657 = vmul.f32 %v655, %v655
  %v658 = vsel %vm646, %v657, 0.0
  %v659 = vadd.f32 %v656, %v658
  %660 = vadd.xlane.f32.xlu0 %v659
  %v661 = vpop.xlane.xlu0 %660
  %v662 = vmul.f32 %v661, 0.0078125
  %v663 = vld [vmem:[%s3] sm:$0xff]
  %v664 = vadd.f32 %v662, 1e-05
  %v665 = vrsqrt.pop %v664
  %v666 = vmul.f32 %v663, %v665
  %v667 = vld [vmem:[%s4] sm:$0xff]
  %v668 = vmul.f32 %v651, %v666
  %v669 = vsub.f32 %v667, %v668
  %671 = vset.pattern.permute.xlu0 0
  %672 = vperm.xlu0 %671, %v666
  %v673 = vpop.permute.xlu0 %672
  %v675 = vmul.f32 %v630, %v673
  %v676 = vmul.f32 %v631, %v673
  %678 = vset.pattern.permute.xlu0 0
  %679 = vperm.xlu0 %678, %v669
  %v680 = vpop.permute.xlu0 %679
  %v682 = vadd.f32 %v675, %v680
  %v683 = vadd.f32 %v676, %v680
  %vm684 = vcmp.ge.f32.partialorder %v682, 0.0
  %vm685 = vcmp.ge.f32.partialorder %v683, 0.0
  %v686 = vmul.f32 %v682, 0.2
  %v687 = vmul.f32 %v683, 0.2
  %v688 = vsel %vm684, %v682, %v686
  %v689 = vsel %vm685, %v683, %v687
  %690 = vst [vmem:[%s5] sm:$0xff] %v688
  %691 = vst.msk [vmem:[%s5 + $0x8] sm:$0xff] %vm646, %v689
  // Predicated region
  $region22: #{down_forward.1} parent=0 // pred_check
    _
  $region23: #{down_forward.1} parent=0 // pred_check_branch
    %693 = sbr.rel (0) target = $region25
  $region24: #{down_forward.1} parent=0 // pred_region
    _
  $region25: #{down_forward.1} parent=0 // pred_fallthru
    _
  // Predicated region
  $region26: #{down_forward.1} parent=0 // pred_check
    _
  $region27: #{down_forward.1} parent=0 // pred_check_branch
    %695 = sbr.rel (0) target = $region29
  $region28: #{down_forward.1} parent=0 // pred_region
    _
  $region29: #{down_forward.1} parent=0 // pred_fallthru
    _

</llo_original>
